<compile_context>
chip_gen: v5e
topology: v5e:2x2
jax: 0.10.0
libtpu: 0.0.40
codegen_flags: <defaults>
</compile_context>

<pallas_src>
from functools import partial

import numpy as np
import jax
import jax.numpy as jnp
from jax.experimental import pallas as pl
from jax.experimental.pallas import tpu as pltpu


def actor_kernel(x_ref, w1_ref, b1_ref, w2_ref, b2_ref, w3_ref, b3_ref, out_ref):
    # fc1 + relu (MXU accumulates in f32; bias/relu in f32 regardless of input dtype)
    h1 = jnp.dot(x_ref[...], w1_ref[...], preferred_element_type=jnp.float32)
    h1 = jnp.maximum(h1 + b1_ref[...], 0.0)
    # fc2 + relu
    h2 = jnp.dot(h1.astype(w2_ref.dtype), w2_ref[...],
                 preferred_element_type=jnp.float32)
    h2 = jnp.maximum(h2 + b2_ref[...], 0.0)
    # output layer + 2 * tanh
    o = jnp.dot(h2.astype(w3_ref.dtype), w3_ref[...],
                preferred_element_type=jnp.float32)
    out_ref[...] = (2.0 * jnp.tanh(o + b3_ref[...])).astype(out_ref.dtype)


def _round_up(n, m):
    return ((n + m - 1) // m) * m


def prepare_actor_params(params, compute_dtype=jnp.bfloat16):
    """One-time padding + casting of the Actor parameters.

    Weights are zero-padded to lane-aligned (multiples of 128) shapes and cast
    to `compute_dtype`; biases stay f32 (they feed the f32 bias/relu/tanh
    path).  Zero padding is mathematically exact.  Returns (padded_dict, A).
    """
    S, H1 = params["w1_t"].shape
    H2 = params["w2_t"].shape[1]
    A = params["w3_t"].shape[1]
    S_p, H1_p, H2_p, A_p = (_round_up(d, 128) for d in (S, H1, H2, A))

    def pad(a, rows, cols, dt):
        a = jnp.asarray(a)
        return jnp.zeros((rows, cols), dt).at[:a.shape[0], :a.shape[1]].set(a.astype(dt))

    cdt = compute_dtype
    padded = {
        "w1": pad(params["w1_t"], S_p, H1_p, cdt),
        "b1": pad(params["b1"], 1, H1_p, jnp.float32),
        "w2": pad(params["w2_t"], H1_p, H2_p, cdt),
        "b2": pad(params["b2"], 1, H2_p, jnp.float32),
        "w3": pad(params["w3_t"], H2_p, A_p, cdt),
        "b3": pad(params["b3"], 1, A_p, jnp.float32),
    }
    return padded, A


@partial(jax.jit, static_argnames=("num_actions", "batch_tile"))
def actor_forward(x, padded, *, num_actions, batch_tile=512):
    """x: (B, state_dim) f32; padded: output of prepare_actor_params.

    Returns (B, num_actions) f32 actions in [-2, 2].
    """
    w1, b1 = padded["w1"], padded["b1"]
    w2, b2 = padded["w2"], padded["b2"]
    w3, b3 = padded["w3"], padded["b3"]

    cdt = w1.dtype
    B, S = x.shape
    S_p, H1_p = w1.shape
    H2_p = w2.shape[1]
    A_p = w3.shape[1]

    # Dtype-aware sublane granularity: bf16 packs 2 rows/sublane -> 16-row tiles.
    packing = max(1, 4 // jnp.dtype(cdt).itemsize)
    sublane = 8 * packing

    # Adaptive batch tiling: >= 2 grid steps whenever the batch allows it (so
    # both v7x TensorCores get work), tile size derived from B to bound
    # padding waste, capped near batch_tile for VMEM friendliness.
    if B < 2 * sublane:
        steps = 1
    else:
        steps = max(2, pl.cdiv(B, batch_tile))
    TB = _round_up(pl.cdiv(B, steps), sublane)
    B_p = TB * steps

    xp = jnp.zeros((B_p, S_p), cdt).at[:B, :S].set(x.astype(cdt))

    def batch_spec(n):
        return pl.BlockSpec((TB, n), lambda i: (i, 0))

    def resident_spec(r, c):
        # Same block index every grid step -> stays parked in VMEM.
        return pl.BlockSpec((r, c), lambda i: (0, 0))

    out = pl.pallas_call(
        actor_kernel,
        out_shape=jax.ShapeDtypeStruct((B_p, A_p), cdt),
        grid=(steps,),
        in_specs=[
            batch_spec(S_p),
            resident_spec(S_p, H1_p), resident_spec(1, H1_p),
            resident_spec(H1_p, H2_p), resident_spec(1, H2_p),
            resident_spec(H2_p, A_p), resident_spec(1, A_p),
        ],
        out_specs=batch_spec(A_p),
        compiler_params=pltpu.CompilerParams(
            dimension_semantics=("parallel",)),
    )(xp, w1, b1, w2, b2, w3, b3)

    return out[:B, :num_actions].astype(jnp.float32)


def init_actor_params(key, state_dim, num_actions):
    """Deterministic init mirroring the PyTorch module's __init__.

    fc1 / fc2 weights: uniform(-1/sqrt(fan_in), 1/sqrt(fan_in))  [init_fanin]
    fc1 / fc2 biases:  PyTorch default Linear init uniform(-1/sqrt(fan_in), ..)
    output weight/bias: uniform(-0.003, 0.003)
    Weights are stored transposed (in_features, out_features) for the kernel.
    """
    k1, k2, k3, k4, k5, k6 = jax.random.split(key, 6)

    def u(k, shape, bound):
        return jax.random.uniform(k, shape, jnp.float32, -bound, bound)

    v1 = 1.0 / np.sqrt(state_dim)
    v2 = 1.0 / np.sqrt(400)
    v3 = 1.0 / np.sqrt(300)
    return {
        "w1_t": u(k1, (state_dim, 400), v1),
        "b1":   u(k2, (1, 400), v1),
        "w2_t": u(k3, (400, 300), v2),
        "b2":   u(k4, (1, 300), v2),
        "w3_t": u(k5, (300, num_actions), 0.003),
        "b3":   u(k6, (1, num_actions), 0.003),
    }


def actor_reference(x, params):
    h1 = jnp.maximum(x @ params["w1_t"] + params["b1"], 0.0)
    h2 = jnp.maximum(h1 @ params["w2_t"] + params["b2"], 0.0)
    return 2.0 * jnp.tanh(h2 @ params["w3_t"] + params["b3"])


if __name__ == "__main__":
    key = jax.random.PRNGKey(0)
    k_params, k_x, k_xl = jax.random.split(key, 3)

    state_dim, num_actions = 4, 2  # CartPole-ish
    params = init_actor_params(k_params, state_dim, num_actions)

    # Small batch (grid=(1,)).
    x = jax.random.normal(k_x, (2, state_dim), jnp.float32)
    ref = actor_reference(x, params)

    # f32 path: tight tolerance against the pure-JAX reference.
    pp_f32, A = prepare_actor_params(params, compute_dtype=jnp.float32)
    out_f32 = jax.block_until_ready(actor_forward(x, pp_f32, num_actions=A))
    np.testing.assert_allclose(np.asarray(out_f32), np.asarray(ref),
                               rtol=1e-5, atol=1e-5)

    # bf16 default fast path (f32 accumulation): loose tolerance.
    pp_bf16, _ = prepare_actor_params(params)  # compute_dtype=bf16 default
    out_bf16 = jax.block_until_ready(actor_forward(x, pp_bf16, num_actions=A))
    np.testing.assert_allclose(np.asarray(out_bf16), np.asarray(ref),
                               rtol=2e-2, atol=2e-2)

    # Larger batch: exercises the adaptive >=2-step "parallel" grid.
    xl = jax.random.normal(k_xl, (300, state_dim), jnp.float32)
    refl = actor_reference(xl, params)
    outl = jax.block_until_ready(actor_forward(xl, pp_bf16, num_actions=A))
    np.testing.assert_allclose(np.asarray(outl), np.asarray(refl),
                               rtol=2e-2, atol=2e-2)

    print("KERNEL_OK")
</pallas_src>

<mosaic_0001>
module attributes {stable_mosaic.version = 11 : i64} {
  func.func @actor_kernel(%arg0: i32, %arg1: memref<8x128xf32, #tpu.memory_space<vmem>>, %arg2: memref<128x512xf32, #tpu.memory_space<vmem>>, %arg3: memref<1x512xf32, #tpu.memory_space<vmem>>, %arg4: memref<512x384xf32, #tpu.memory_space<vmem>>, %arg5: memref<1x384xf32, #tpu.memory_space<vmem>>, %arg6: memref<384x128xf32, #tpu.memory_space<vmem>>, %arg7: memref<1x128xf32, #tpu.memory_space<vmem>>, %arg8: memref<8x128xf32, #tpu.memory_space<vmem>>) attributes {dimension_semantics = [#tpu.dimension_semantics<parallel>], iteration_bounds = array<i64: 1>, scalar_prefetch = 0 : i64, scratch_operands = 0 : i64, tpu.core_type = #tpu.core_type<tc>, window_params = [{transform_indices = @transform_0, window_bounds = array<i64: 8, 128>}, {pipeline_mode = #tpu.pipeline_mode<synchronous>, transform_indices = @transform_1, window_bounds = array<i64: 128, 512>}, {pipeline_mode = #tpu.pipeline_mode<synchronous>, transform_indices = @transform_2, window_bounds = array<i64: 1, 512>}, {pipeline_mode = #tpu.pipeline_mode<synchronous>, transform_indices = @transform_3, window_bounds = array<i64: 512, 384>}, {pipeline_mode = #tpu.pipeline_mode<synchronous>, transform_indices = @transform_4, window_bounds = array<i64: 1, 384>}, {pipeline_mode = #tpu.pipeline_mode<synchronous>, transform_indices = @transform_5, window_bounds = array<i64: 384, 128>}, {pipeline_mode = #tpu.pipeline_mode<synchronous>, transform_indices = @transform_6, window_bounds = array<i64: 1, 128>}, {transform_indices = @transform_7, window_bounds = array<i64: 8, 128>}]} {
    %c0 = arith.constant 0 : index
    %c0_0 = arith.constant 0 : index
    %0 = vector.load %arg1[%c0, %c0_0] : memref<8x128xf32, #tpu.memory_space<vmem>>, vector<8x128xf32>
    %c0_1 = arith.constant 0 : index
    %c0_2 = arith.constant 0 : index
    %1 = vector.load %arg2[%c0_1, %c0_2] : memref<128x512xf32, #tpu.memory_space<vmem>>, vector<128x512xf32>
    %cst = arith.constant dense<0.000000e+00> : vector<8x512xf32>
    %2 = tpu.matmul %0, %1, %cst {dimension_numbers = #tpu.dot_dimension_numbers<[1], [0], [0], [1], [0, 0, 1, 1], [], []>} : vector<8x128xf32>, vector<128x512xf32>, vector<8x512xf32> -> vector<8x512xf32>
    %c0_3 = arith.constant 0 : index
    %c0_4 = arith.constant 0 : index
    %3 = vector.load %arg3[%c0_3, %c0_4] : memref<1x512xf32, #tpu.memory_space<vmem>>, vector<1x512xf32>
    %4 = vector.broadcast %3 : vector<1x512xf32> to vector<8x512xf32>
    %5 = arith.addf %2, %4 : vector<8x512xf32>
    %cst_5 = arith.constant 0.000000e+00 : f32
    %6 = vector.broadcast %cst_5 : f32 to vector<8x512xf32>
    %7 = arith.maximumf %5, %6 : vector<8x512xf32>
    %c0_6 = arith.constant 0 : index
    %c0_7 = arith.constant 0 : index
    %8 = vector.load %arg4[%c0_6, %c0_7] : memref<512x384xf32, #tpu.memory_space<vmem>>, vector<512x384xf32>
    %cst_8 = arith.constant dense<0.000000e+00> : vector<8x384xf32>
    %9 = tpu.matmul %7, %8, %cst_8 {dimension_numbers = #tpu.dot_dimension_numbers<[1], [0], [0], [1], [0, 0, 1, 1], [], []>} : vector<8x512xf32>, vector<512x384xf32>, vector<8x384xf32> -> vector<8x384xf32>
    %c0_9 = arith.constant 0 : index
    %c0_10 = arith.constant 0 : index
    %10 = vector.load %arg5[%c0_9, %c0_10] : memref<1x384xf32, #tpu.memory_space<vmem>>, vector<1x384xf32>
    %11 = vector.broadcast %10 : vector<1x384xf32> to vector<8x384xf32>
    %12 = arith.addf %9, %11 : vector<8x384xf32>
    %cst_11 = arith.constant 0.000000e+00 : f32
    %13 = vector.broadcast %cst_11 : f32 to vector<8x384xf32>
    %14 = arith.maximumf %12, %13 : vector<8x384xf32>
    %c0_12 = arith.constant 0 : index
    %c0_13 = arith.constant 0 : index
    %15 = vector.load %arg6[%c0_12, %c0_13] : memref<384x128xf32, #tpu.memory_space<vmem>>, vector<384x128xf32>
    %cst_14 = arith.constant dense<0.000000e+00> : vector<8x128xf32>
    %16 = tpu.matmul %14, %15, %cst_14 {dimension_numbers = #tpu.dot_dimension_numbers<[1], [0], [0], [1], [0, 0, 1, 1], [], []>} : vector<8x384xf32>, vector<384x128xf32>, vector<8x128xf32> -> vector<8x128xf32>
    %c0_15 = arith.constant 0 : index
    %c0_16 = arith.constant 0 : index
    %17 = vector.load %arg7[%c0_15, %c0_16] : memref<1x128xf32, #tpu.memory_space<vmem>>, vector<1x128xf32>
    %18 = vector.broadcast %17 : vector<1x128xf32> to vector<8x128xf32>
    %19 = arith.addf %16, %18 : vector<8x128xf32>
    %20 = math.tanh %19 : vector<8x128xf32>
    %cst_17 = arith.constant 2.000000e+00 : f32
    %21 = vector.broadcast %cst_17 : f32 to vector<8x128xf32>
    %22 = arith.mulf %21, %20 : vector<8x128xf32>
    %c0_18 = arith.constant 0 : index
    %c0_19 = arith.constant 0 : index
    %23 = vector.load %arg8[%c0_18, %c0_19] : memref<8x128xf32, #tpu.memory_space<vmem>>, vector<8x128xf32>
    tpu.vector_store %arg8[%c0_18, %c0_19], %22 {strides = array<i32>} : memref<8x128xf32, #tpu.memory_space<vmem>>, vector<8x128xf32>,
    return
  }
  func.func @transform_0(%arg0: i32) -> (i32, i32) {
    %c0_i32 = arith.constant 0 : i32
    %c0_i32_0 = arith.constant 0 : i32
    return %arg0, %c0_i32 : i32, i32
  }
  func.func @transform_1(%arg0: i32) -> (i32, i32) {
    %c0_i32 = arith.constant 0 : i32
    %c0_i32_0 = arith.constant 0 : i32
    %c0_i32_1 = arith.constant 0 : i32
    return %c0_i32, %c0_i32_0 : i32, i32
  }
  func.func @transform_2(%arg0: i32) -> (i32, i32) {
    %c0_i32 = arith.constant 0 : i32
    %c0_i32_0 = arith.constant 0 : i32
    %c0_i32_1 = arith.constant 0 : i32
    return %c0_i32, %c0_i32_0 : i32, i32
  }
  func.func @transform_3(%arg0: i32) -> (i32, i32) {
    %c0_i32 = arith.constant 0 : i32
    %c0_i32_0 = arith.constant 0 : i32
    %c0_i32_1 = arith.constant 0 : i32
    return %c0_i32, %c0_i32_0 : i32, i32
  }
  func.func @transform_4(%arg0: i32) -> (i32, i32) {
    %c0_i32 = arith.constant 0 : i32
    %c0_i32_0 = arith.constant 0 : i32
    %c0_i32_1 = arith.constant 0 : i32
    return %c0_i32, %c0_i32_0 : i32, i32
  }
  func.func @transform_5(%arg0: i32) -> (i32, i32) {
    %c0_i32 = arith.constant 0 : i32
    %c0_i32_0 = arith.constant 0 : i32
    %c0_i32_1 = arith.constant 0 : i32
    return %c0_i32, %c0_i32_0 : i32, i32
  }
  func.func @transform_6(%arg0: i32) -> (i32, i32) {
    %c0_i32 = arith.constant 0 : i32
    %c0_i32_0 = arith.constant 0 : i32
    %c0_i32_1 = arith.constant 0 : i32
    return %c0_i32, %c0_i32_0 : i32, i32
  }
  func.func @transform_7(%arg0: i32) -> (i32, i32) {
    %c0_i32 = arith.constant 0 : i32
    %c0_i32_0 = arith.constant 0 : i32
    return %arg0, %c0_i32 : i32, i32
  }
}

</mosaic_0001>

<llo_original>
// kernel: actor_forward.1
$region0: #{actor_forward.1}
  #allocation0 [shape = 'u32[]', space=smem, size = 0x4, offset = 0x4, fixed_abs, tag = 'smem constant byte address 0x4 - core index']
  #allocation1 [shape = 'u32[72,128]{1,0:T(1,128)}', space=vmem, size = 0x9000, scoped, tag = 'internal scratch']
  %s0 = inlined_call_operand.vmem [shape: f32[8,128], index: 0, kind: input, shape index: {}]
  %s1 = inlined_call_operand.hbm [shape: f32[128,512], index: 1, kind: input, shape index: {}]
  %s2 = inlined_call_operand.vmem [shape: f32[1,512], index: 2, kind: input, shape index: {}]
  %s3 = inlined_call_operand.hbm [shape: f32[512,384], index: 3, kind: input, shape index: {}]
  %s4 = inlined_call_operand.vmem [shape: f32[1,384], index: 4, kind: input, shape index: {}]
  %s5 = inlined_call_operand.hbm [shape: f32[384,128], index: 5, kind: input, shape index: {}]
  %s6 = inlined_call_operand.vmem [shape: f32[1,128], index: 6, kind: input, shape index: {}]
  %s7 = inlined_call_operand.vmem [shape: f32[8,128], index: 7, kind: output, shape index: {}]
  %s8 = sld [smem:[#allocation0]]
  $region50: #{actor_forward.1} parent=0
    _
  %s10 = ssub.s32 1, %s8
  %s11 = scalar_select 0, %s10, %s8
  $region1: #{actor_forward.1} parent=0
    #allocation2 [shape = 'u8[262144]{0}', space=vmem, size = 0x40000, scoped, tag = 'input window, operand 1, single buffered']
    #allocation3 [shape = 's32[1]{0}', space=sflag, size = 0x4, scoped, tag = 'scoped memory for actor_forward.1']
    #allocation4 [shape = 'u8[786432]{0}', space=vmem, size = 0xc0000, scoped, tag = 'input window, operand 3, single buffered']
    #allocation5 [shape = 's32[1]{0}', space=sflag, size = 0x4, scoped, tag = 'scoped memory for actor_forward.1']
    #allocation6 [shape = 'u8[196608]{0}', space=vmem, size = 0x30000, scoped, tag = 'input window, operand 5, single buffered']
    %12 = vsyncpa [#allocation3], 0
    %13 = vsyncpa [#allocation5], 0
    // Predicated region
    $region2: #{actor_forward.1} parent=1 // pred_check
      _
    $region3: #{actor_forward.1} parent=1 // pred_check_branch
      %15 = sbr.rel (0) target = $region5
    $region4: #{actor_forward.1} parent=1 // pred_region
      _
    $region5: #{actor_forward.1} parent=1 // pred_fallthru
      _
    // Predicated region
    $region6: #{actor_forward.1} parent=1 // pred_check
      _
    $region7: #{actor_forward.1} parent=1 // pred_check_branch
      %17 = sbr.rel (0) target = $region9
    $region8: #{actor_forward.1} parent=1 // pred_region
      %19 = vsyncadd [#allocation3], 0
      %s20 = sshll.u32 %s1, 4
      %s21 = int_to_ptr.hbm [resolvable:$true] %s20
      %s22 = sshll.u32 [#allocation2], 4
      %s23 = int_to_ptr.vmem [resolvable:$true] %s22
      %28 = dma.hbm_to_vmem [thread:$0]  %s21, 8192, %s23, [#allocation3], 512, 512, 32
    $region9: #{actor_forward.1} parent=1 // pred_fallthru
      _
    // Predicated region
    $region10: #{actor_forward.1} parent=1 // pred_check
      _
    $region11: #{actor_forward.1} parent=1 // pred_check_branch
      %30 = sbr.rel (0) target = $region13
    $region12: #{actor_forward.1} parent=1 // pred_region
      _
    $region13: #{actor_forward.1} parent=1 // pred_fallthru
      _
    // Predicated region
    $region14: #{actor_forward.1} parent=1 // pred_check
      _
    $region15: #{actor_forward.1} parent=1 // pred_check_branch
      %32 = sbr.rel (0) target = $region17
    $region16: #{actor_forward.1} parent=1 // pred_region
      %34 = vsyncadd [#allocation5], 0
      %s35 = sshll.u32 %s3, 4
      %s36 = int_to_ptr.hbm [resolvable:$true] %s35
      %s37 = sshll.u32 [#allocation4], 4
      %s38 = int_to_ptr.vmem [resolvable:$true] %s37
      %43 = dma.hbm_to_vmem [thread:$0]  %s36, 24576, %s38, [#allocation5], 384, 384, 24
    $region17: #{actor_forward.1} parent=1 // pred_fallthru
      _
    // Predicated region
    $region18: #{actor_forward.1} parent=1 // pred_check
      _
    $region19: #{actor_forward.1} parent=1 // pred_check_branch
      %45 = sbr.rel (0) target = $region21
    $region20: #{actor_forward.1} parent=1 // pred_region
      _
    $region21: #{actor_forward.1} parent=1 // pred_fallthru
      _
    // Predicated region
    $region22: #{actor_forward.1} parent=1 // pred_check
      _
    $region23: #{actor_forward.1} parent=1 // pred_check_branch
      %47 = sbr.rel (0) target = $region25
    $region24: #{actor_forward.1} parent=1 // pred_region
      %49 = vsyncadd [#allocation5], 0
      %s50 = sshll.u32 %s5, 4
      %s51 = int_to_ptr.hbm [resolvable:$true] %s50
      %s52 = sshll.u32 [#allocation6], 4
      %s53 = int_to_ptr.vmem [resolvable:$true] %s52
      %58 = dma.hbm_to_vmem [thread:$0]  %s51, 6144, %s53, [#allocation5], 128, 128, 8
    $region25: #{actor_forward.1} parent=1 // pred_fallthru
      _
    // Predicated region
    $region26: #{actor_forward.1} parent=1 // pred_check
      _
    $region27: #{actor_forward.1} parent=1 // pred_check_branch
      %60 = sbr.rel (0) target = $region29
    $region28: #{actor_forward.1} parent=1 // pred_region
      _
    $region29: #{actor_forward.1} parent=1 // pred_fallthru
      _
    // Predicated region
    $region30: #{actor_forward.1} parent=1 // pred_check
      _
    $region31: #{actor_forward.1} parent=1 // pred_check_branch
      %62 = sbr.rel (0) target = $region33
    $region32: #{actor_forward.1} parent=1 // pred_region
      %64 = dma.done [#allocation3], 8192
    $region33: #{actor_forward.1} parent=1 // pred_fallthru
      _
    // Predicated region
    $region34: #{actor_forward.1} parent=1 // pred_check
      _
    $region35: #{actor_forward.1} parent=1 // pred_check_branch
      %66 = sbr.rel (0) target = $region37
    $region36: #{actor_forward.1} parent=1 // pred_region
      %68 = dma.done [#allocation5], 24576
    $region37: #{actor_forward.1} parent=1 // pred_fallthru
      _
    // Predicated region
    $region38: #{actor_forward.1} parent=1 // pred_check
      _
    $region39: #{actor_forward.1} parent=1 // pred_check_branch
      %70 = sbr.rel (0) target = $region41
    $region40: #{actor_forward.1} parent=1 // pred_region
      %72 = dma.done [#allocation5], 6144
    $region41: #{actor_forward.1} parent=1 // pred_fallthru
      _
    %v73 = vld [vmem:[%s0] sm:$0xff]
    %v74 = vld [vmem:[#allocation2] sm:$0xff]
    %v75 = vld [vmem:[#allocation2 + $0x8] sm:$0xff]
    %v76 = vld [vmem:[#allocation2 + $0x10] sm:$0xff]
    %v77 = vld [vmem:[#allocation2 + $0x18] sm:$0xff]
    %v78 = vld [vmem:[#allocation2 + $0x20] sm:$0xff]
    %v79 = vld [vmem:[#allocation2 + $0x28] sm:$0xff]
    %v80 = vld [vmem:[#allocation2 + $0x30] sm:$0xff]
    %v81 = vld [vmem:[#allocation2 + $0x38] sm:$0xff]
    %v82 = vld [vmem:[#allocation2 + $0x40] sm:$0xff]
    %v83 = vld [vmem:[#allocation2 + $0x48] sm:$0xff]
    %v84 = vld [vmem:[#allocation2 + $0x50] sm:$0xff]
    %v85 = vld [vmem:[#allocation2 + $0x58] sm:$0xff]
    %v86 = vld [vmem:[#allocation2 + $0x60] sm:$0xff]
    %v87 = vld [vmem:[#allocation2 + $0x68] sm:$0xff]
    %v88 = vld [vmem:[#allocation2 + $0x70] sm:$0xff]
    %v89 = vld [vmem:[#allocation2 + $0x78] sm:$0xff]
    %v90 = vld [vmem:[#allocation2 + $0x80] sm:$0xff]
    %v91 = vld [vmem:[#allocation2 + $0x88] sm:$0xff]
    %v92 = vld [vmem:[#allocation2 + $0x90] sm:$0xff]
    %v93 = vld [vmem:[#allocation2 + $0x98] sm:$0xff]
    %v94 = vld [vmem:[#allocation2 + $0xa0] sm:$0xff]
    %v95 = vld [vmem:[#allocation2 + $0xa8] sm:$0xff]
    %v96 = vld [vmem:[#allocation2 + $0xb0] sm:$0xff]
    %v97 = vld [vmem:[#allocation2 + $0xb8] sm:$0xff]
    %v98 = vld [vmem:[#allocation2 + $0xc0] sm:$0xff]
    %v99 = vld [vmem:[#allocation2 + $0xc8] sm:$0xff]
    %v100 = vld [vmem:[#allocation2 + $0xd0] sm:$0xff]
    %v101 = vld [vmem:[#allocation2 + $0xd8] sm:$0xff]
    %v102 = vld [vmem:[#allocation2 + $0xe0] sm:$0xff]
    %v103 = vld [vmem:[#allocation2 + $0xe8] sm:$0xff]
    %v104 = vld [vmem:[#allocation2 + $0xf0] sm:$0xff]
    %v105 = vld [vmem:[#allocation2 + $0xf8] sm:$0xff]
    %v106 = vld [vmem:[#allocation2 + $0x100] sm:$0xff]
    %v107 = vld [vmem:[#allocation2 + $0x108] sm:$0xff]
    %v108 = vld [vmem:[#allocation2 + $0x110] sm:$0xff]
    %v109 = vld [vmem:[#allocation2 + $0x118] sm:$0xff]
    %v110 = vld [vmem:[#allocation2 + $0x120] sm:$0xff]
    %v111 = vld [vmem:[#allocation2 + $0x128] sm:$0xff]
    %v112 = vld [vmem:[#allocation2 + $0x130] sm:$0xff]
    %v113 = vld [vmem:[#allocation2 + $0x138] sm:$0xff]
    %v114 = vld [vmem:[#allocation2 + $0x140] sm:$0xff]
    %v115 = vld [vmem:[#allocation2 + $0x148] sm:$0xff]
    %v116 = vld [vmem:[#allocation2 + $0x150] sm:$0xff]
    %v117 = vld [vmem:[#allocation2 + $0x158] sm:$0xff]
    %v118 = vld [vmem:[#allocation2 + $0x160] sm:$0xff]
    %v119 = vld [vmem:[#allocation2 + $0x168] sm:$0xff]
    %v120 = vld [vmem:[#allocation2 + $0x170] sm:$0xff]
    %v121 = vld [vmem:[#allocation2 + $0x178] sm:$0xff]
    %v122 = vld [vmem:[#allocation2 + $0x180] sm:$0xff]
    %v123 = vld [vmem:[#allocation2 + $0x188] sm:$0xff]
    %v124 = vld [vmem:[#allocation2 + $0x190] sm:$0xff]
    %v125 = vld [vmem:[#allocation2 + $0x198] sm:$0xff]
    %v126 = vld [vmem:[#allocation2 + $0x1a0] sm:$0xff]
    %v127 = vld [vmem:[#allocation2 + $0x1a8] sm:$0xff]
    %v128 = vld [vmem:[#allocation2 + $0x1b0] sm:$0xff]
    %v129 = vld [vmem:[#allocation2 + $0x1b8] sm:$0xff]
    %v130 = vld [vmem:[#allocation2 + $0x1c0] sm:$0xff]
    %v131 = vld [vmem:[#allocation2 + $0x1c8] sm:$0xff]
    %v132 = vld [vmem:[#allocation2 + $0x1d0] sm:$0xff]
    %v133 = vld [vmem:[#allocation2 + $0x1d8] sm:$0xff]
    %v134 = vld [vmem:[#allocation2 + $0x1e0] sm:$0xff]
    %v135 = vld [vmem:[#allocation2 + $0x1e8] sm:$0xff]
    %v136 = vld [vmem:[#allocation2 + $0x1f0] sm:$0xff]
    %v137 = vld [vmem:[#allocation2 + $0x1f8] sm:$0xff]
    %v138 = vld [vmem:[%s2] sm:$0xf]
    %v140 = vperm.slane %v138, 0
    %v141 = vperm.slane %v138, 1
    %v142 = vperm.slane %v138, 2
    %v143 = vperm.slane %v138, 3
    %148 = vmatpush.msra.mxu0 %v134
    %149 = vmatpush.msra.mxu0 %v130
    %150 = vmatpush.msra.mxu0 %v126
    %151 = vmatpush.msra.mxu0 %v122
    %152 = vmatpush.msra.mxu0 %v118
    %153 = vmatpush.msra.mxu0 %v114
    %154 = vmatpush.msra.mxu0 %v110
    %155 = vmatpush.msra.mxu0 %v106
    %156 = vmatpush.msra.mxu0 %v102
    %157 = vmatpush.msra.mxu0 %v98
    %158 = vmatpush.msra.mxu0 %v94
    %159 = vmatpush.msra.mxu0 %v90
    %160 = vmatpush.msra.mxu0 %v86
    %161 = vmatpush.msra.mxu0 %v82
    %162 = vmatpush.msra.mxu0 %v78
    %163 = vmatpush.msra.mxu0 %v74
    %164 = vmatmul.f32.gmra.mxu0 %v73
    %v165 = vpop.f32.mrf.mxu0
    %v166 = vadd.f32 %v140, %v165
    %167 = vdwg.mxu0
    %168 = vmatpush.msra.mxu0 %v135
    %169 = vmatpush.msra.mxu0 %v131
    %170 = vmatpush.msra.mxu0 %v127
    %171 = vmatpush.msra.mxu0 %v123
    %172 = vmatpush.msra.mxu0 %v119
    %173 = vmatpush.msra.mxu0 %v115
    %174 = vmatpush.msra.mxu0 %v111
    %175 = vmatpush.msra.mxu0 %v107
    %176 = vmatpush.msra.mxu0 %v103
    %177 = vmatpush.msra.mxu0 %v99
    %178 = vmatpush.msra.mxu0 %v95
    %179 = vmatpush.msra.mxu0 %v91
    %180 = vmatpush.msra.mxu0 %v87
    %181 = vmatpush.msra.mxu0 %v83
    %182 = vmatpush.msra.mxu0 %v79
    %183 = vmatpush.msra.mxu0 %v75
    %184 = vmatmul.f32.gmra.mxu0 %v73
    %v185 = vpop.f32.mrf.mxu0
    %v186 = vadd.f32 %v141, %v185
    %187 = vdwg.mxu0
    %188 = vmatpush.msra.mxu0 %v136
    %189 = vmatpush.msra.mxu0 %v132
    %190 = vmatpush.msra.mxu0 %v128
    %191 = vmatpush.msra.mxu0 %v124
    %192 = vmatpush.msra.mxu0 %v120
    %193 = vmatpush.msra.mxu0 %v116
    %194 = vmatpush.msra.mxu0 %v112
    %195 = vmatpush.msra.mxu0 %v108
    %196 = vmatpush.msra.mxu0 %v104
    %197 = vmatpush.msra.mxu0 %v100
    %198 = vmatpush.msra.mxu0 %v96
    %199 = vmatpush.msra.mxu0 %v92
    %200 = vmatpush.msra.mxu0 %v88
    %201 = vmatpush.msra.mxu0 %v84
    %202 = vmatpush.msra.mxu0 %v80
    %203 = vmatpush.msra.mxu0 %v76
    %204 = vmatmul.f32.gmra.mxu0 %v73
    %v205 = vpop.f32.mrf.mxu0
    %v206 = vadd.f32 %v142, %v205
    %207 = vdwg.mxu0
    %208 = vmatpush.msra.mxu0 %v137
    %209 = vmatpush.msra.mxu0 %v133
    %210 = vmatpush.msra.mxu0 %v129
    %211 = vmatpush.msra.mxu0 %v125
    %212 = vmatpush.msra.mxu0 %v121
    %213 = vmatpush.msra.mxu0 %v117
    %214 = vmatpush.msra.mxu0 %v113
    %215 = vmatpush.msra.mxu0 %v109
    %216 = vmatpush.msra.mxu0 %v105
    %217 = vmatpush.msra.mxu0 %v101
    %218 = vmatpush.msra.mxu0 %v97
    %219 = vmatpush.msra.mxu0 %v93
    %220 = vmatpush.msra.mxu0 %v89
    %221 = vmatpush.msra.mxu0 %v85
    %222 = vmatpush.msra.mxu0 %v81
    %223 = vmatpush.msra.mxu0 %v77
    %224 = vmatmul.f32.gmra.mxu0 %v73
    %v225 = vpop.f32.mrf.mxu0
    %v226 = vadd.f32 %v143, %v225
    %227 = vdwg.mxu0
    %v228 = vmax.f32 %v166, 0.0
    %v229 = vmax.f32 %v186, 0.0
    %v230 = vmax.f32 %v206, 0.0
    %v231 = vmax.f32 %v226, 0.0
    %v232 = vld [vmem:[#allocation4] sm:$0xff]
    %v233 = vld [vmem:[#allocation4 + $0x8] sm:$0xff]
    %v234 = vld [vmem:[#allocation4 + $0x10] sm:$0xff]
    %v235 = vld [vmem:[#allocation4 + $0x18] sm:$0xff]
    %v236 = vld [vmem:[#allocation4 + $0x20] sm:$0xff]
    %v237 = vld [vmem:[#allocation4 + $0x28] sm:$0xff]
    %v238 = vld [vmem:[#allocation4 + $0x30] sm:$0xff]
    %v239 = vld [vmem:[#allocation4 + $0x38] sm:$0xff]
    %v240 = vld [vmem:[#allocation4 + $0x40] sm:$0xff]
    %v241 = vld [vmem:[#allocation4 + $0x48] sm:$0xff]
    %v242 = vld [vmem:[#allocation4 + $0x50] sm:$0xff]
    %v243 = vld [vmem:[#allocation4 + $0x58] sm:$0xff]
    %v244 = vld [vmem:[#allocation4 + $0x60] sm:$0xff]
    %v245 = vld [vmem:[#allocation4 + $0x68] sm:$0xff]
    %v246 = vld [vmem:[#allocation4 + $0x70] sm:$0xff]
    %v247 = vld [vmem:[#allocation4 + $0x78] sm:$0xff]
    %v248 = vld [vmem:[#allocation4 + $0x80] sm:$0xff]
    %v249 = vld [vmem:[#allocation4 + $0x88] sm:$0xff]
    %v250 = vld [vmem:[#allocation4 + $0x90] sm:$0xff]
    %v251 = vld [vmem:[#allocation4 + $0x98] sm:$0xff]
    %v252 = vld [vmem:[#allocation4 + $0xa0] sm:$0xff]
    %v253 = vld [vmem:[#allocation4 + $0xa8] sm:$0xff]
    %v254 = vld [vmem:[#allocation4 + $0xb0] sm:$0xff]
    %v255 = vld [vmem:[#allocation4 + $0xb8] sm:$0xff]
    %v256 = vld [vmem:[#allocation4 + $0xc0] sm:$0xff]
    %v257 = vld [vmem:[#allocation4 + $0xc8] sm:$0xff]
    %v258 = vld [vmem:[#allocation4 + $0xd0] sm:$0xff]
    %v259 = vld [vmem:[#allocation4 + $0xd8] sm:$0xff]
    %v260 = vld [vmem:[#allocation4 + $0xe0] sm:$0xff]
    %v261 = vld [vmem:[#allocation4 + $0xe8] sm:$0xff]
    %v262 = vld [vmem:[#allocation4 + $0xf0] sm:$0xff]
    %v263 = vld [vmem:[#allocation4 + $0xf8] sm:$0xff]
    %v264 = vld [vmem:[#allocation4 + $0x100] sm:$0xff]
    %v265 = vld [vmem:[#allocation4 + $0x108] sm:$0xff]
    %v266 = vld [vmem:[#allocation4 + $0x110] sm:$0xff]
    %v267 = vld [vmem:[#allocation4 + $0x118] sm:$0xff]
    %v268 = vld [vmem:[#allocation4 + $0x120] sm:$0xff]
    %v269 = vld [vmem:[#allocation4 + $0x128] sm:$0xff]
    %v270 = vld [vmem:[#allocation4 + $0x130] sm:$0xff]
    %v271 = vld [vmem:[#allocation4 + $0x138] sm:$0xff]
    %v272 = vld [vmem:[#allocation4 + $0x140] sm:$0xff]
    %v273 = vld [vmem:[#allocation4 + $0x148] sm:$0xff]
    %v274 = vld [vmem:[#allocation4 + $0x150] sm:$0xff]
    %v275 = vld [vmem:[#allocation4 + $0x158] sm:$0xff]
    %v276 = vld [vmem:[#allocation4 + $0x160] sm:$0xff]
    %v277 = vld [vmem:[#allocation4 + $0x168] sm:$0xff]
    %v278 = vld [vmem:[#allocation4 + $0x170] sm:$0xff]
    %v279 = vld [vmem:[#allocation4 + $0x178] sm:$0xff]
    %v280 = vld [vmem:[#allocation4 + $0x180] sm:$0xff]
    %v281 = vld [vmem:[#allocation4 + $0x188] sm:$0xff]
    %v282 = vld [vmem:[#allocation4 + $0x190] sm:$0xff]
    %v283 = vld [vmem:[#allocation4 + $0x198] sm:$0xff]
    %v284 = vld [vmem:[#allocation4 + $0x1a0] sm:$0xff]
    %v285 = vld [vmem:[#allocation4 + $0x1a8] sm:$0xff]
    %v286 = vld [vmem:[#allocation4 + $0x1b0] sm:$0xff]
    %v287 = vld [vmem:[#allocation4 + $0x1b8] sm:$0xff]
    %v288 = vld [vmem:[#allocation4 + $0x1c0] sm:$0xff]
    %v289 = vld [vmem:[#allocation4 + $0x1c8] sm:$0xff]
    %v290 = vld [vmem:[#allocation4 + $0x1d0] sm:$0xff]
    %v291 = vld [vmem:[#allocation4 + $0x1d8] sm:$0xff]
    %v292 = vld [vmem:[#allocation4 + $0x1e0] sm:$0xff]
    %v293 = vld [vmem:[#allocation4 + $0x1e8] sm:$0xff]
    %v294 = vld [vmem:[#allocation4 + $0x1f0] sm:$0xff]
    %v295 = vld [vmem:[#allocation4 + $0x1f8] sm:$0xff]
    %v296 = vld [vmem:[#allocation4 + $0x200] sm:$0xff]
    %v297 = vld [vmem:[#allocation4 + $0x208] sm:$0xff]
    %v298 = vld [vmem:[#allocation4 + $0x210] sm:$0xff]
    %v299 = vld [vmem:[#allocation4 + $0x218] sm:$0xff]
    %v300 = vld [vmem:[#allocation4 + $0x220] sm:$0xff]
    %v301 = vld [vmem:[#allocation4 + $0x228] sm:$0xff]
    %v302 = vld [vmem:[#allocation4 + $0x230] sm:$0xff]
    %v303 = vld [vmem:[#allocation4 + $0x238] sm:$0xff]
    %v304 = vld [vmem:[#allocation4 + $0x240] sm:$0xff]
    %v305 = vld [vmem:[#allocation4 + $0x248] sm:$0xff]
    %v306 = vld [vmem:[#allocation4 + $0x250] sm:$0xff]
    %v307 = vld [vmem:[#allocation4 + $0x258] sm:$0xff]
    %v308 = vld [vmem:[#allocation4 + $0x260] sm:$0xff]
    %v309 = vld [vmem:[#allocation4 + $0x268] sm:$0xff]
    %v310 = vld [vmem:[#allocation4 + $0x270] sm:$0xff]
    %v311 = vld [vmem:[#allocation4 + $0x278] sm:$0xff]
    %v312 = vld [vmem:[#allocation4 + $0x280] sm:$0xff]
    %v313 = vld [vmem:[#allocation4 + $0x288] sm:$0xff]
    %v314 = vld [vmem:[#allocation4 + $0x290] sm:$0xff]
    %v315 = vld [vmem:[#allocation4 + $0x298] sm:$0xff]
    %v316 = vld [vmem:[#allocation4 + $0x2a0] sm:$0xff]
    %v317 = vld [vmem:[#allocation4 + $0x2a8] sm:$0xff]
    %v318 = vld [vmem:[#allocation4 + $0x2b0] sm:$0xff]
    %v319 = vld [vmem:[#allocation4 + $0x2b8] sm:$0xff]
    %v320 = vld [vmem:[#allocation4 + $0x2c0] sm:$0xff]
    %v321 = vld [vmem:[#allocation4 + $0x2c8] sm:$0xff]
    %v322 = vld [vmem:[#allocation4 + $0x2d0] sm:$0xff]
    %v323 = vld [vmem:[#allocation4 + $0x2d8] sm:$0xff]
    %v324 = vld [vmem:[#allocation4 + $0x2e0] sm:$0xff]
    %v325 = vld [vmem:[#allocation4 + $0x2e8] sm:$0xff]
    %v326 = vld [vmem:[#allocation4 + $0x2f0] sm:$0xff]
    %v327 = vld [vmem:[#allocation4 + $0x2f8] sm:$0xff]
    %v328 = vld [vmem:[#allocation4 + $0x300] sm:$0xff]
    %v329 = vld [vmem:[#allocation4 + $0x308] sm:$0xff]
    %v330 = vld [vmem:[#allocation4 + $0x310] sm:$0xff]
    %v331 = vld [vmem:[#allocation4 + $0x318] sm:$0xff]
    %v332 = vld [vmem:[#allocation4 + $0x320] sm:$0xff]
    %v333 = vld [vmem:[#allocation4 + $0x328] sm:$0xff]
    %v334 = vld [vmem:[#allocation4 + $0x330] sm:$0xff]
    %v335 = vld [vmem:[#allocation4 + $0x338] sm:$0xff]
    %v336 = vld [vmem:[#allocation4 + $0x340] sm:$0xff]
    %v337 = vld [vmem:[#allocation4 + $0x348] sm:$0xff]
    %v338 = vld [vmem:[#allocation4 + $0x350] sm:$0xff]
    %v339 = vld [vmem:[#allocation4 + $0x358] sm:$0xff]
    %v340 = vld [vmem:[#allocation4 + $0x360] sm:$0xff]
    %v341 = vld [vmem:[#allocation4 + $0x368] sm:$0xff]
    %v342 = vld [vmem:[#allocation4 + $0x370] sm:$0xff]
    %v343 = vld [vmem:[#allocation4 + $0x378] sm:$0xff]
    %v344 = vld [vmem:[#allocation4 + $0x380] sm:$0xff]
    %v345 = vld [vmem:[#allocation4 + $0x388] sm:$0xff]
    %v346 = vld [vmem:[#allocation4 + $0x390] sm:$0xff]
    %v347 = vld [vmem:[#allocation4 + $0x398] sm:$0xff]
    %v348 = vld [vmem:[#allocation4 + $0x3a0] sm:$0xff]
    %v349 = vld [vmem:[#allocation4 + $0x3a8] sm:$0xff]
    %v350 = vld [vmem:[#allocation4 + $0x3b0] sm:$0xff]
    %v351 = vld [vmem:[#allocation4 + $0x3b8] sm:$0xff]
    %v352 = vld [vmem:[#allocation4 + $0x3c0] sm:$0xff]
    %v353 = vld [vmem:[#allocation4 + $0x3c8] sm:$0xff]
    %v354 = vld [vmem:[#allocation4 + $0x3d0] sm:$0xff]
    %v355 = vld [vmem:[#allocation4 + $0x3d8] sm:$0xff]
    %v356 = vld [vmem:[#allocation4 + $0x3e0] sm:$0xff]
    %v357 = vld [vmem:[#allocation4 + $0x3e8] sm:$0xff]
    %v358 = vld [vmem:[#allocation4 + $0x3f0] sm:$0xff]
    %v359 = vld [vmem:[#allocation4 + $0x3f8] sm:$0xff]
    %v360 = vld [vmem:[#allocation4 + $0x400] sm:$0xff]
    %v361 = vld [vmem:[#allocation4 + $0x408] sm:$0xff]
    %v362 = vld [vmem:[#allocation4 + $0x410] sm:$0xff]
    %v363 = vld [vmem:[#allocation4 + $0x418] sm:$0xff]
    %v364 = vld [vmem:[#allocation4 + $0x420] sm:$0xff]
    %v365 = vld [vmem:[#allocation4 + $0x428] sm:$0xff]
    %v366 = vld [vmem:[#allocation4 + $0x430] sm:$0xff]
    %v367 = vld [vmem:[#allocation4 + $0x438] sm:$0xff]
    %v368 = vld [vmem:[#allocation4 + $0x440] sm:$0xff]
    %v369 = vld [vmem:[#allocation4 + $0x448] sm:$0xff]
    %v370 = vld [vmem:[#allocation4 + $0x450] sm:$0xff]
    %v371 = vld [vmem:[#allocation4 + $0x458] sm:$0xff]
    %v372 = vld [vmem:[#allocation4 + $0x460] sm:$0xff]
    %v373 = vld [vmem:[#allocation4 + $0x468] sm:$0xff]
    %v374 = vld [vmem:[#allocation4 + $0x470] sm:$0xff]
    %v375 = vld [vmem:[#allocation4 + $0x478] sm:$0xff]
    %v376 = vld [vmem:[#allocation4 + $0x480] sm:$0xff]
    %v377 = vld [vmem:[#allocation4 + $0x488] sm:$0xff]
    %v378 = vld [vmem:[#allocation4 + $0x490] sm:$0xff]
    %v379 = vld [vmem:[#allocation4 + $0x498] sm:$0xff]
    %v380 = vld [vmem:[#allocation4 + $0x4a0] sm:$0xff]
    %v381 = vld [vmem:[#allocation4 + $0x4a8] sm:$0xff]
    %v382 = vld [vmem:[#allocation4 + $0x4b0] sm:$0xff]
    %v383 = vld [vmem:[#allocation4 + $0x4b8] sm:$0xff]
    %v384 = vld [vmem:[#allocation4 + $0x4c0] sm:$0xff]
    %v385 = vld [vmem:[#allocation4 + $0x4c8] sm:$0xff]
    %v386 = vld [vmem:[#allocation4 + $0x4d0] sm:$0xff]
    %v387 = vld [vmem:[#allocation4 + $0x4d8] sm:$0xff]
    %v388 = vld [vmem:[#allocation4 + $0x4e0] sm:$0xff]
    %v389 = vld [vmem:[#allocation4 + $0x4e8] sm:$0xff]
    %v390 = vld [vmem:[#allocation4 + $0x4f0] sm:$0xff]
    %v391 = vld [vmem:[#allocation4 + $0x4f8] sm:$0xff]
    %v392 = vld [vmem:[#allocation4 + $0x500] sm:$0xff]
    %v393 = vld [vmem:[#allocation4 + $0x508] sm:$0xff]
    %v394 = vld [vmem:[#allocation4 + $0x510] sm:$0xff]
    %v395 = vld [vmem:[#allocation4 + $0x518] sm:$0xff]
    %v396 = vld [vmem:[#allocation4 + $0x520] sm:$0xff]
    %v397 = vld [vmem:[#allocation4 + $0x528] sm:$0xff]
    %v398 = vld [vmem:[#allocation4 + $0x530] sm:$0xff]
    %v399 = vld [vmem:[#allocation4 + $0x538] sm:$0xff]
    %v400 = vld [vmem:[#allocation4 + $0x540] sm:$0xff]
    %v401 = vld [vmem:[#allocation4 + $0x548] sm:$0xff]
    %v402 = vld [vmem:[#allocation4 + $0x550] sm:$0xff]
    %v403 = vld [vmem:[#allocation4 + $0x558] sm:$0xff]
    %v404 = vld [vmem:[#allocation4 + $0x560] sm:$0xff]
    %v405 = vld [vmem:[#allocation4 + $0x568] sm:$0xff]
    %v406 = vld [vmem:[#allocation4 + $0x570] sm:$0xff]
    %v407 = vld [vmem:[#allocation4 + $0x578] sm:$0xff]
    %v408 = vld [vmem:[#allocation4 + $0x580] sm:$0xff]
    %v409 = vld [vmem:[#allocation4 + $0x588] sm:$0xff]
    %v410 = vld [vmem:[#allocation4 + $0x590] sm:$0xff]
    %v411 = vld [vmem:[#allocation4 + $0x598] sm:$0xff]
    %v412 = vld [vmem:[#allocation4 + $0x5a0] sm:$0xff]
    %v413 = vld [vmem:[#allocation4 + $0x5a8] sm:$0xff]
    %v414 = vld [vmem:[#allocation4 + $0x5b0] sm:$0xff]
    %v415 = vld [vmem:[#allocation4 + $0x5b8] sm:$0xff]
    %v416 = vld [vmem:[#allocation4 + $0x5c0] sm:$0xff]
    %v417 = vld [vmem:[#allocation4 + $0x5c8] sm:$0xff]
    %v418 = vld [vmem:[#allocation4 + $0x5d0] sm:$0xff]
    %v419 = vld [vmem:[#allocation4 + $0x5d8] sm:$0xff]
    %v420 = vld [vmem:[#allocation4 + $0x5e0] sm:$0xff]
    %v421 = vld [vmem:[#allocation4 + $0x5e8] sm:$0xff]
    %v422 = vld [vmem:[#allocation4 + $0x5f0] sm:$0xff]
    %v423 = vld [vmem:[#allocation4 + $0x5f8] sm:$0xff]
    %v424 = vld [vmem:[%s4] sm:$0x7]
    %v426 = vperm.slane %v424, 0
    %v427 = vperm.slane %v424, 1
    %v428 = vperm.slane %v424, 2
    %432 = vmatpush.msra.mxu0 %v277
    %433 = vmatpush.msra.mxu0 %v274
    %434 = vmatpush.msra.mxu0 %v271
    %435 = vmatpush.msra.mxu0 %v268
    %436 = vmatpush.msra.mxu0 %v265
    %437 = vmatpush.msra.mxu0 %v262
    %438 = vmatpush.msra.mxu0 %v259
    %439 = vmatpush.msra.mxu0 %v256
    %440 = vmatpush.msra.mxu0 %v253
    %441 = vmatpush.msra.mxu0 %v250
    %442 = vmatpush.msra.mxu0 %v247
    %443 = vmatpush.msra.mxu0 %v244
    %444 = vmatpush.msra.mxu0 %v241
    %445 = vmatpush.msra.mxu0 %v238
    %446 = vmatpush.msra.mxu0 %v235
    %447 = vmatpush.msra.mxu0 %v232
    %448 = vmatmul.f32.gmra.mxu0 %v228
    %v449 = vpop.f32.mrf.mxu0
    %v450 = vadd.f32 %v426, %v449
    %451 = vdwg.mxu0
    %452 = vmatpush.msra.mxu0 %v325
    %453 = vmatpush.msra.mxu0 %v322
    %454 = vmatpush.msra.mxu0 %v319
    %455 = vmatpush.msra.mxu0 %v316
    %456 = vmatpush.msra.mxu0 %v313
    %457 = vmatpush.msra.mxu0 %v310
    %458 = vmatpush.msra.mxu0 %v307
    %459 = vmatpush.msra.mxu0 %v304
    %460 = vmatpush.msra.mxu0 %v301
    %461 = vmatpush.msra.mxu0 %v298
    %462 = vmatpush.msra.mxu0 %v295
    %463 = vmatpush.msra.mxu0 %v292
    %464 = vmatpush.msra.mxu0 %v289
    %465 = vmatpush.msra.mxu0 %v286
    %466 = vmatpush.msra.mxu0 %v283
    %467 = vmatpush.msra.mxu0 %v280
    %468 = vmatmul.f32.gmra.mxu0 %v229
    %v469 = vpop.f32.mrf.mxu0
    %v470 = vadd.f32 %v450, %v469
    %471 = vdwg.mxu0
    %472 = vmatpush.msra.mxu0 %v373
    %473 = vmatpush.msra.mxu0 %v370
    %474 = vmatpush.msra.mxu0 %v367
    %475 = vmatpush.msra.mxu0 %v364
    %476 = vmatpush.msra.mxu0 %v361
    %477 = vmatpush.msra.mxu0 %v358
    %478 = vmatpush.msra.mxu0 %v355
    %479 = vmatpush.msra.mxu0 %v352
    %480 = vmatpush.msra.mxu0 %v349
    %481 = vmatpush.msra.mxu0 %v346
    %482 = vmatpush.msra.mxu0 %v343
    %483 = vmatpush.msra.mxu0 %v340
    %484 = vmatpush.msra.mxu0 %v337
    %485 = vmatpush.msra.mxu0 %v334
    %486 = vmatpush.msra.mxu0 %v331
    %487 = vmatpush.msra.mxu0 %v328
    %488 = vmatmul.f32.gmra.mxu0 %v230
    %v489 = vpop.f32.mrf.mxu0
    %v490 = vadd.f32 %v470, %v489
    %491 = vdwg.mxu0
    %492 = vmatpush.msra.mxu0 %v421
    %493 = vmatpush.msra.mxu0 %v418
    %494 = vmatpush.msra.mxu0 %v415
    %495 = vmatpush.msra.mxu0 %v412
    %496 = vmatpush.msra.mxu0 %v409
    %497 = vmatpush.msra.mxu0 %v406
    %498 = vmatpush.msra.mxu0 %v403
    %499 = vmatpush.msra.mxu0 %v400
    %500 = vmatpush.msra.mxu0 %v397
    %501 = vmatpush.msra.mxu0 %v394
    %502 = vmatpush.msra.mxu0 %v391
    %503 = vmatpush.msra.mxu0 %v388
    %504 = vmatpush.msra.mxu0 %v385
    %505 = vmatpush.msra.mxu0 %v382
    %506 = vmatpush.msra.mxu0 %v379
    %507 = vmatpush.msra.mxu0 %v376
    %508 = vmatmul.f32.gmra.mxu0 %v231
    %v509 = vpop.f32.mrf.mxu0
    %v510 = vadd.f32 %v490, %v509
    %511 = vdwg.mxu0
    %512 = vmatpush.msra.mxu0 %v278
    %513 = vmatpush.msra.mxu0 %v275
    %514 = vmatpush.msra.mxu0 %v272
    %515 = vmatpush.msra.mxu0 %v269
    %516 = vmatpush.msra.mxu0 %v266
    %517 = vmatpush.msra.mxu0 %v263
    %518 = vmatpush.msra.mxu0 %v260
    %519 = vmatpush.msra.mxu0 %v257
    %520 = vmatpush.msra.mxu0 %v254
    %521 = vmatpush.msra.mxu0 %v251
    %522 = vmatpush.msra.mxu0 %v248
    %523 = vmatpush.msra.mxu0 %v245
    %524 = vmatpush.msra.mxu0 %v242
    %525 = vmatpush.msra.mxu0 %v239
    %526 = vmatpush.msra.mxu0 %v236
    %527 = vmatpush.msra.mxu0 %v233
    %528 = vmatmul.f32.gmra.mxu0 %v228
    %v529 = vpop.f32.mrf.mxu0
    %v530 = vadd.f32 %v427, %v529
    %531 = vdwg.mxu0
    %532 = vmatpush.msra.mxu0 %v326
    %533 = vmatpush.msra.mxu0 %v323
    %534 = vmatpush.msra.mxu0 %v320
    %535 = vmatpush.msra.mxu0 %v317
    %536 = vmatpush.msra.mxu0 %v314
    %537 = vmatpush.msra.mxu0 %v311
    %538 = vmatpush.msra.mxu0 %v308
    %539 = vmatpush.msra.mxu0 %v305
    %540 = vmatpush.msra.mxu0 %v302
    %541 = vmatpush.msra.mxu0 %v299
    %542 = vmatpush.msra.mxu0 %v296
    %543 = vmatpush.msra.mxu0 %v293
    %544 = vmatpush.msra.mxu0 %v290
    %545 = vmatpush.msra.mxu0 %v287
    %546 = vmatpush.msra.mxu0 %v284
    %547 = vmatpush.msra.mxu0 %v281
    %548 = vmatmul.f32.gmra.mxu0 %v229
    %v549 = vpop.f32.mrf.mxu0
    %v550 = vadd.f32 %v530, %v549
    %551 = vdwg.mxu0
    %552 = vmatpush.msra.mxu0 %v374
    %553 = vmatpush.msra.mxu0 %v371
    %554 = vmatpush.msra.mxu0 %v368
    %555 = vmatpush.msra.mxu0 %v365
    %556 = vmatpush.msra.mxu0 %v362
    %557 = vmatpush.msra.mxu0 %v359
    %558 = vmatpush.msra.mxu0 %v356
    %559 = vmatpush.msra.mxu0 %v353
    %560 = vmatpush.msra.mxu0 %v350
    %561 = vmatpush.msra.mxu0 %v347
    %562 = vmatpush.msra.mxu0 %v344
    %563 = vmatpush.msra.mxu0 %v341
    %564 = vmatpush.msra.mxu0 %v338
    %565 = vmatpush.msra.mxu0 %v335
    %566 = vmatpush.msra.mxu0 %v332
    %567 = vmatpush.msra.mxu0 %v329
    %568 = vmatmul.f32.gmra.mxu0 %v230
    %v569 = vpop.f32.mrf.mxu0
    %v570 = vadd.f32 %v550, %v569
    %571 = vdwg.mxu0
    %572 = vmatpush.msra.mxu0 %v422
    %573 = vmatpush.msra.mxu0 %v419
    %574 = vmatpush.msra.mxu0 %v416
    %575 = vmatpush.msra.mxu0 %v413
    %576 = vmatpush.msra.mxu0 %v410
    %577 = vmatpush.msra.mxu0 %v407
    %578 = vmatpush.msra.mxu0 %v404
    %579 = vmatpush.msra.mxu0 %v401
    %580 = vmatpush.msra.mxu0 %v398
    %581 = vmatpush.msra.mxu0 %v395
    %582 = vmatpush.msra.mxu0 %v392
    %583 = vmatpush.msra.mxu0 %v389
    %584 = vmatpush.msra.mxu0 %v386
    %585 = vmatpush.msra.mxu0 %v383
    %586 = vmatpush.msra.mxu0 %v380
    %587 = vmatpush.msra.mxu0 %v377
    %588 = vmatmul.f32.gmra.mxu0 %v231
    %v589 = vpop.f32.mrf.mxu0
    %v590 = vadd.f32 %v570, %v589
    %591 = vdwg.mxu0
    %592 = vmatpush.msra.mxu0 %v279
    %593 = vmatpush.msra.mxu0 %v276
    %594 = vmatpush.msra.mxu0 %v273
    %595 = vmatpush.msra.mxu0 %v270
    %596 = vmatpush.msra.mxu0 %v267
    %597 = vmatpush.msra.mxu0 %v264
    %598 = vmatpush.msra.mxu0 %v261
    %599 = vmatpush.msra.mxu0 %v258
    %600 = vmatpush.msra.mxu0 %v255
    %601 = vmatpush.msra.mxu0 %v252
    %602 = vmatpush.msra.mxu0 %v249
    %603 = vmatpush.msra.mxu0 %v246
    %604 = vmatpush.msra.mxu0 %v243
    %605 = vmatpush.msra.mxu0 %v240
    %606 = vmatpush.msra.mxu0 %v237
    %607 = vmatpush.msra.mxu0 %v234
    %608 = vmatmul.f32.gmra.mxu0 %v228
    %v609 = vpop.f32.mrf.mxu0
    %v610 = vadd.f32 %v428, %v609
    %611 = vdwg.mxu0
    %612 = vmatpush.msra.mxu0 %v327
    %613 = vmatpush.msra.mxu0 %v324
    %614 = vmatpush.msra.mxu0 %v321
    %615 = vmatpush.msra.mxu0 %v318
    %616 = vmatpush.msra.mxu0 %v315
    %617 = vmatpush.msra.mxu0 %v312
    %618 = vmatpush.msra.mxu0 %v309
    %619 = vmatpush.msra.mxu0 %v306
    %620 = vmatpush.msra.mxu0 %v303
    %621 = vmatpush.msra.mxu0 %v300
    %622 = vmatpush.msra.mxu0 %v297
    %623 = vmatpush.msra.mxu0 %v294
    %624 = vmatpush.msra.mxu0 %v291
    %625 = vmatpush.msra.mxu0 %v288
    %626 = vmatpush.msra.mxu0 %v285
    %627 = vmatpush.msra.mxu0 %v282
    %628 = vmatmul.f32.gmra.mxu0 %v229
    %v629 = vpop.f32.mrf.mxu0
    %v630 = vadd.f32 %v610, %v629
    %631 = vdwg.mxu0
    %632 = vmatpush.msra.mxu0 %v375
    %633 = vmatpush.msra.mxu0 %v372
    %634 = vmatpush.msra.mxu0 %v369
    %635 = vmatpush.msra.mxu0 %v366
    %636 = vmatpush.msra.mxu0 %v363
    %637 = vmatpush.msra.mxu0 %v360
    %638 = vmatpush.msra.mxu0 %v357
    %639 = vmatpush.msra.mxu0 %v354
    %640 = vmatpush.msra.mxu0 %v351
    %641 = vmatpush.msra.mxu0 %v348
    %642 = vmatpush.msra.mxu0 %v345
    %643 = vmatpush.msra.mxu0 %v342
    %644 = vmatpush.msra.mxu0 %v339
    %645 = vmatpush.msra.mxu0 %v336
    %646 = vmatpush.msra.mxu0 %v333
    %647 = vmatpush.msra.mxu0 %v330
    %648 = vmatmul.f32.gmra.mxu0 %v230
    %v649 = vpop.f32.mrf.mxu0
    %v650 = vadd.f32 %v630, %v649
    %651 = vdwg.mxu0
    %652 = vmatpush.msra.mxu0 %v423
    %653 = vmatpush.msra.mxu0 %v420
    %654 = vmatpush.msra.mxu0 %v417
    %655 = vmatpush.msra.mxu0 %v414
    %656 = vmatpush.msra.mxu0 %v411
    %657 = vmatpush.msra.mxu0 %v408
    %658 = vmatpush.msra.mxu0 %v405
    %659 = vmatpush.msra.mxu0 %v402
    %660 = vmatpush.msra.mxu0 %v399
    %661 = vmatpush.msra.mxu0 %v396
    %662 = vmatpush.msra.mxu0 %v393
    %663 = vmatpush.msra.mxu0 %v390
    %664 = vmatpush.msra.mxu0 %v387
    %665 = vmatpush.msra.mxu0 %v384
    %666 = vmatpush.msra.mxu0 %v381
    %667 = vmatpush.msra.mxu0 %v378
    %668 = vmatmul.f32.gmra.mxu0 %v231
    %v669 = vpop.f32.mrf.mxu0
    %v670 = vadd.f32 %v650, %v669
    %671 = vdwg.mxu0
    %v672 = vmax.f32 %v510, 0.0
    %v673 = vmax.f32 %v590, 0.0
    %v674 = vmax.f32 %v670, 0.0
    %v675 = vld [vmem:[#allocation6] sm:$0xff]
    %v676 = vld [vmem:[#allocation6 + $0x8] sm:$0xff]
    %v677 = vld [vmem:[#allocation6 + $0x10] sm:$0xff]
    %v678 = vld [vmem:[#allocation6 + $0x18] sm:$0xff]
    %v679 = vld [vmem:[#allocation6 + $0x20] sm:$0xff]
    %v680 = vld [vmem:[#allocation6 + $0x28] sm:$0xff]
    %v681 = vld [vmem:[#allocation6 + $0x30] sm:$0xff]
    %v682 = vld [vmem:[#allocation6 + $0x38] sm:$0xff]
    %v683 = vld [vmem:[#allocation6 + $0x40] sm:$0xff]
    %v684 = vld [vmem:[#allocation6 + $0x48] sm:$0xff]
    %v685 = vld [vmem:[#allocation6 + $0x50] sm:$0xff]
    %v686 = vld [vmem:[#allocation6 + $0x58] sm:$0xff]
    %v687 = vld [vmem:[#allocation6 + $0x60] sm:$0xff]
    %v688 = vld [vmem:[#allocation6 + $0x68] sm:$0xff]
    %v689 = vld [vmem:[#allocation6 + $0x70] sm:$0xff]
    %v690 = vld [vmem:[#allocation6 + $0x78] sm:$0xff]
    %v691 = vld [vmem:[#allocation6 + $0x80] sm:$0xff]
    %v692 = vld [vmem:[#allocation6 + $0x88] sm:$0xff]
    %v693 = vld [vmem:[#allocation6 + $0x90] sm:$0xff]
    %v694 = vld [vmem:[#allocation6 + $0x98] sm:$0xff]
    %v695 = vld [vmem:[#allocation6 + $0xa0] sm:$0xff]
    %v696 = vld [vmem:[#allocation6 + $0xa8] sm:$0xff]
    %v697 = vld [vmem:[#allocation6 + $0xb0] sm:$0xff]
    %v698 = vld [vmem:[#allocation6 + $0xb8] sm:$0xff]
    %v699 = vld [vmem:[#allocation6 + $0xc0] sm:$0xff]
    %v700 = vld [vmem:[#allocation6 + $0xc8] sm:$0xff]
    %v701 = vld [vmem:[#allocation6 + $0xd0] sm:$0xff]
    %v702 = vld [vmem:[#allocation6 + $0xd8] sm:$0xff]
    %v703 = vld [vmem:[#allocation6 + $0xe0] sm:$0xff]
    %v704 = vld [vmem:[#allocation6 + $0xe8] sm:$0xff]
    %v705 = vld [vmem:[#allocation6 + $0xf0] sm:$0xff]
    %v706 = vld [vmem:[#allocation6 + $0xf8] sm:$0xff]
    %v707 = vld [vmem:[#allocation6 + $0x100] sm:$0xff]
    %v708 = vld [vmem:[#allocation6 + $0x108] sm:$0xff]
    %v709 = vld [vmem:[#allocation6 + $0x110] sm:$0xff]
    %v710 = vld [vmem:[#allocation6 + $0x118] sm:$0xff]
    %v711 = vld [vmem:[#allocation6 + $0x120] sm:$0xff]
    %v712 = vld [vmem:[#allocation6 + $0x128] sm:$0xff]
    %v713 = vld [vmem:[#allocation6 + $0x130] sm:$0xff]
    %v714 = vld [vmem:[#allocation6 + $0x138] sm:$0xff]
    %v715 = vld [vmem:[#allocation6 + $0x140] sm:$0xff]
    %v716 = vld [vmem:[#allocation6 + $0x148] sm:$0xff]
    %v717 = vld [vmem:[#allocation6 + $0x150] sm:$0xff]
    %v718 = vld [vmem:[#allocation6 + $0x158] sm:$0xff]
    %v719 = vld [vmem:[#allocation6 + $0x160] sm:$0xff]
    %v720 = vld [vmem:[#allocation6 + $0x168] sm:$0xff]
    %v721 = vld [vmem:[#allocation6 + $0x170] sm:$0xff]
    %v722 = vld [vmem:[#allocation6 + $0x178] sm:$0xff]
    %v723 = vld [vmem:[%s6] sm:$0x1]
    %v725 = vperm.slane %v723, 0
    %727 = vmatpush.msra.mxu0 %v690
    %728 = vmatpush.msra.mxu0 %v689
    %729 = vmatpush.msra.mxu0 %v688
    %730 = vmatpush.msra.mxu0 %v687
    %731 = vmatpush.msra.mxu0 %v686
    %732 = vmatpush.msra.mxu0 %v685
    %733 = vmatpush.msra.mxu0 %v684
    %734 = vmatpush.msra.mxu0 %v683
    %735 = vmatpush.msra.mxu0 %v682
    %736 = vmatpush.msra.mxu0 %v681
    %737 = vmatpush.msra.mxu0 %v680
    %738 = vmatpush.msra.mxu0 %v679
    %739 = vmatpush.msra.mxu0 %v678
    %740 = vmatpush.msra.mxu0 %v677
    %741 = vmatpush.msra.mxu0 %v676
    %742 = vmatpush.msra.mxu0 %v675
    %743 = vmatmul.f32.gmra.mxu0 %v672
    %v744 = vpop.f32.mrf.mxu0
    %v745 = vadd.f32 %v725, %v744
    %746 = vdwg.mxu0
    %747 = vmatpush.msra.mxu0 %v706
    %748 = vmatpush.msra.mxu0 %v705
    %749 = vmatpush.msra.mxu0 %v704
    %750 = vmatpush.msra.mxu0 %v703
    %751 = vmatpush.msra.mxu0 %v702
    %752 = vmatpush.msra.mxu0 %v701
    %753 = vmatpush.msra.mxu0 %v700
    %754 = vmatpush.msra.mxu0 %v699
    %755 = vmatpush.msra.mxu0 %v698
    %756 = vmatpush.msra.mxu0 %v697
    %757 = vmatpush.msra.mxu0 %v696
    %758 = vmatpush.msra.mxu0 %v695
    %759 = vmatpush.msra.mxu0 %v694
    %760 = vmatpush.msra.mxu0 %v693
    %761 = vmatpush.msra.mxu0 %v692
    %762 = vmatpush.msra.mxu0 %v691
    %763 = vmatmul.f32.gmra.mxu0 %v673
    %v764 = vpop.f32.mrf.mxu0
    %v765 = vadd.f32 %v745, %v764
    %766 = vdwg.mxu0
    %767 = vmatpush.msra.mxu0 %v722
    %768 = vmatpush.msra.mxu0 %v721
    %769 = vmatpush.msra.mxu0 %v720
    %770 = vmatpush.msra.mxu0 %v719
    %771 = vmatpush.msra.mxu0 %v718
    %772 = vmatpush.msra.mxu0 %v717
    %773 = vmatpush.msra.mxu0 %v716
    %774 = vmatpush.msra.mxu0 %v715
    %775 = vmatpush.msra.mxu0 %v714
    %776 = vmatpush.msra.mxu0 %v713
    %777 = vmatpush.msra.mxu0 %v712
    %778 = vmatpush.msra.mxu0 %v711
    %779 = vmatpush.msra.mxu0 %v710
    %780 = vmatpush.msra.mxu0 %v709
    %781 = vmatpush.msra.mxu0 %v708
    %782 = vmatpush.msra.mxu0 %v707
    %783 = vmatmul.f32.gmra.mxu0 %v674
    %v784 = vpop.f32.mrf.mxu0
    %v785 = vadd.f32 %v765, %v784
    %786 = vdwg.mxu0
    %v787 = vtanh.pop %v785
    %v788 = vmul.f32 %v787, 2.0
    %789 = vst [vmem:[%s7] sm:$0xff] %v788
    // Predicated region
    $region42: #{actor_forward.1} parent=1 // pred_check
      _
    $region43: #{actor_forward.1} parent=1 // pred_check_branch
      %791 = sbr.rel (0) target = $region45
    $region44: #{actor_forward.1} parent=1 // pred_region
      _
    $region45: #{actor_forward.1} parent=1 // pred_fallthru
      _
    // Predicated region
    $region46: #{actor_forward.1} parent=1 // pred_check
      _
    $region47: #{actor_forward.1} parent=1 // pred_check_branch
      %793 = sbr.rel (0) target = $region49
    $region48: #{actor_forward.1} parent=1 // pred_region
      _
    $region49: #{actor_forward.1} parent=1 // pred_fallthru
      _
    %794 = vsyncpa [#allocation3], 1
    %795 = vsyncpa [#allocation5], 1

</llo_original>
